<compile_context>
chip_gen: v6e
topology: v6e:2x2x1
jax: 0.10.0
libtpu: 0.0.40
codegen_flags: <defaults>
</compile_context>

<pallas_src>
import functools

import jax
import jax.numpy as jnp
import numpy as np
from jax.experimental import pallas as pl
from jax.experimental.pallas import tpu as pltpu

_LANE = 128


# --------------------------------------------------------------------------- #
# Hardware queries / budgets
# --------------------------------------------------------------------------- #
def _sublane_align(dtype) -> int:
    """Min second-to-last tile multiple: f32 -> 8, bf16 -> 16, int8/fp8 -> 32."""
    itemsize = jnp.dtype(dtype).itemsize
    return max(8, 32 // max(itemsize, 1))


def _vmem_capacity_bytes() -> int:
    """Physical VMEM per TensorCore, conservative fallback (v7x = 64 MiB)."""
    try:
        cap = int(pltpu.get_tpu_info().vmem_capacity_bytes)
        if cap > 0:
            return cap
    except Exception:
        pass
    return 64 << 20


def _tensorcores_per_device() -> int:
    """Heuristic megacore / dual-TC detection (v4/v5p megacore, v7x dual TC)."""
    try:
        kind = jax.devices()[0].device_kind.lower()
    except Exception:
        return 1
    if any(t in kind for t in ("v2", "v3", "lite", "v5e", "v6e")):
        return 1
    return 2


def _default_vmem_budget() -> int:
    cap = _vmem_capacity_bytes()
    # v5e/v6e have 128 MiB/core: use most of it (bigger tiles -> HBM roofline).
    # 64 MiB parts (v7x) keep more headroom.
    frac = 0.75 if cap >= (100 << 20) else 0.5
    return int(cap * frac)


# --------------------------------------------------------------------------- #
# Tile selection
# --------------------------------------------------------------------------- #
def _footprint_bytes(tm, tn, tk, x_item, w_item, *, w_buffers=2, with_acc=True):
    x_bytes = 2 * tm * tk * x_item                  # double-buffered input tile
    w_bytes = w_buffers * tk * (2 * tn) * w_item    # fused [real|imag] weight
    o_bytes = 2 * tm * tn * 4                       # double-buffered f32 output
    acc_bytes = tm * (2 * tn) * 4 if with_acc else 0
    return x_bytes + w_bytes + o_bytes + acc_bytes


def _tile_candidates(dim, align, include_full=True):
    """Multiples of `align` that evenly divide `dim`, descending."""
    cands = [dim] if include_full else []
    d = (dim // align) * align
    while d >= align:
        if d != dim and dim % d == 0:
            cands.append(d)
        d -= align
    return cands


def _choose_weight_tiles(K, N_pad, w_item, x_item, budget, tm_nominal=256):
    """Return (tn, tk, single_buffer_weight)."""

    def fits(tn, tk, w_buffers, with_acc):
        return _footprint_bytes(tm_nominal, tn, tk, x_item, w_item,
                                w_buffers=w_buffers,
                                with_acc=with_acc) <= budget

    # 1) Whole fused weight resident (default double buffering).
    if fits(N_pad, K, 2, False):
        return N_pad, K, False
    # 2) Whole fused weight resident, single-buffered: the block index is
    #    constant across the entire grid so the 2nd pipeline buffer is waste.
    #    Lets up to ~2x larger weights stay resident (matters most on v7x).
    if fits(N_pad, K, 1, False):
        return N_pad, K, True
    # 3) Keep tk == K and stream tn panels.  With the batch axis inner to the
    #    output-panel axis, each 2*tn weight panel is DMA'd from HBM exactly
    #    once; choosing the largest fitting tn minimizes x refetch (N/tn).
    for tn in _tile_candidates(N_pad, _LANE, include_full=False):
        if fits(tn, K, 2, False):
            return tn, K, False
    # 4) Last resort: split the reduction dimension (multi-k accumulator path).
    for tn in _tile_candidates(N_pad, _LANE, include_full=True):
        for tk in _tile_candidates(K, _LANE, include_full=False):
            if fits(tn, tk, 2, True):
                return tn, tk, False
    # Nothing meets the nominal budget: minimal legal tiles (still runs; the
    # per-call vmem_limit is raised to the actual footprint).
    tn = _LANE
    tk = _LANE if (K >= _LANE and K % _LANE == 0) else K
    return tn, tk, False


def _choose_batch_tile(B, tn, tk, x_item, w_item, budget, sub_align,
                       w_buffers, with_acc, n_out_blocks, n_cores, cap=2048):
    tm = None
    t = (min(B, cap) // sub_align) * sub_align
    while t >= sub_align:
        if B % t == 0 and _footprint_bytes(
                t, tn, tk, x_item, w_item,
                w_buffers=w_buffers, with_acc=with_acc) <= budget:
            tm = t
            break
        t -= sub_align
    if tm is None:
        tm = B  # full-extent batch block is always a legal BlockSpec shape
    # Dual-TC parts only: make sure at least one parallel grid axis has >= 2
    # blocks so the second TensorCore gets work.  (On single-TC v5e/v6e this
    # would just underfill the MXU for no gain.)
    if n_cores >= 2 and n_out_blocks == 1 and B // tm == 1:
        half = tm // 2
        if half >= sub_align and half % sub_align == 0 and B % half == 0:
            tm = half
    return tm


def _validate_tiles(B, K, N_pad, tm, tn, tk, x_dtype):
    sub_x = _sublane_align(x_dtype)

    def _check(name, t, dim, align):
        if t <= 0 or dim % t != 0:
            raise ValueError(f"{name}={t} must evenly divide its dimension ({dim}).")
        if t != dim and t % align != 0:
            raise ValueError(
                f"{name}={t} must be a multiple of {align} (TPU tiling rule) "
                f"unless it equals the full dimension {dim}.")

    _check("tm (batch tile)", tm, B, sub_x)
    _check("tk (reduction tile)", tk, K, _LANE)
    _check("tn (output tile)", tn, N_pad, _LANE)


# --------------------------------------------------------------------------- #
# Kernels
# --------------------------------------------------------------------------- #
def _epilogue(scale_ref, acc, o_ref):
    tn = o_ref.shape[-1]
    re = acc[:, :tn]          # tn is a multiple of 128 -> lane-aligned split
    im = acc[:, tn:]
    scale = jnp.exp(scale_ref[0])             # EUP slot: effectively free
    o_ref[...] = (scale * (re * re + im * im)).astype(o_ref.dtype)


def _opu_kernel_fused_k(scale_ref, x_ref, w_ref, o_ref):
    """tk == K: one MXU burst per output tile, no accumulator VMEM traffic."""
    x = x_ref[...]
    if x.dtype != w_ref.dtype:                # bf16 path: in-kernel cast (VPU,
        x = x.astype(w_ref.dtype)             # hidden under the MXU burst)
    acc = jnp.dot(x, w_ref[...], preferred_element_type=jnp.float32)
    _epilogue(scale_ref, acc, o_ref)


def _opu_kernel_multi_k(scale_ref, x_ref, w_ref, o_ref, acc_ref):
    """tk < K: f32 VMEM accumulator over the innermost reduction axis."""
    k = pl.program_id(2)
    nk = pl.num_programs(2)
    x = x_ref[...]
    if x.dtype != w_ref.dtype:
        x = x.astype(w_ref.dtype)
    prod = jnp.dot(x, w_ref[...], preferred_element_type=jnp.float32)

    @pl.when(k == 0)                          # write, not zero-init + add
    def _():
        acc_ref[...] = prod

    @pl.when(jnp.logical_and(k > 0, k < nk - 1))
    def _():
        acc_ref[...] = acc_ref[...] + prod

    @pl.when(k == nk - 1)                     # fold the last partial product
    def _():                                  # straight into the epilogue
        _epilogue(scale_ref, acc_ref[...] + prod, o_ref)


# --------------------------------------------------------------------------- #
# pallas_call wrapper
# --------------------------------------------------------------------------- #
@functools.partial(jax.jit, static_argnames=("tm", "tn", "tk", "single_buffer_w"))
def opu_forward(x, w_fused, log_scale, *, tm, tn, tk, single_buffer_w=False):
    """x: (B, K); w_fused: (K, 2*N_pad) per-tn-block interleaved; log_scale: (1,)."""
    B, K = x.shape
    K_w, twoN = w_fused.shape
    assert K_w == K, f"weight K={K_w} does not match input K={K}"
    N_pad = twoN // 2

    x_item = jnp.dtype(x.dtype).itemsize
    w_item = jnp.dtype(w_fused.dtype).itemsize
    nk = K // tk
    with_acc = nk > 1
    w_buffers = 1 if single_buffer_w else 2

    fp = _footprint_bytes(tm, tn, tk, x_item, w_item,
                          w_buffers=w_buffers, with_acc=with_acc)
    cap = _vmem_capacity_bytes()
    vmem_limit = int(min(max(fp * 1.25 + (2 << 20), 32 << 20), cap * 0.92))

    # Single-buffer the resident weight only when its block index is constant
    # across the whole grid (tn == N_pad and tk == K), chosen by the tile policy.
    w_kwargs = dict(pipeline_mode=pl.Buffered(1)) if single_buffer_w else {}

    if not with_acc:
        # 2-D grid: output panels outermost, batch inner (weight panel DMA'd once).
        grid = (N_pad // tn, B // tm)
        grid_spec = pltpu.PrefetchScalarGridSpec(
            num_scalar_prefetch=1,                      # log_scale -> SMEM
            grid=grid,
            in_specs=[
                # NOTE: pl.Buffered(3) on x is a possible small win when the
                # weight is resident and tm is small; not enabled by default.
                pl.BlockSpec((tm, tk), lambda j, i, s: (i, 0)),
                pl.BlockSpec((tk, 2 * tn), lambda j, i, s: (0, j), **w_kwargs),
            ],
            out_specs=pl.BlockSpec((tm, tn), lambda j, i, s: (i, j)),
        )
        kernel = _opu_kernel_fused_k
        dims = ("parallel", "parallel")
    else:
        grid = (N_pad // tn, B // tm, nk)
        grid_spec = pltpu.PrefetchScalarGridSpec(
            num_scalar_prefetch=1,
            grid=grid,
            in_specs=[
                pl.BlockSpec((tm, tk), lambda j, i, k, s: (i, k)),
                pl.BlockSpec((tk, 2 * tn), lambda j, i, k, s: (k, j), **w_kwargs),
            ],
            out_specs=pl.BlockSpec((tm, tn), lambda j, i, k, s: (i, j)),
            scratch_shapes=[pltpu.VMEM((tm, 2 * tn), jnp.float32)],
        )
        kernel = _opu_kernel_multi_k
        dims = ("parallel", "parallel", "arbitrary")

    return pl.pallas_call(
        kernel,
        out_shape=jax.ShapeDtypeStruct((B, N_pad), jnp.float32),
        grid_spec=grid_spec,
        compiler_params=pltpu.CompilerParams(
            dimension_semantics=dims,
            vmem_limit_bytes=vmem_limit,
        ),
    )(log_scale, x, w_fused)


# --------------------------------------------------------------------------- #
# Module wrapper (JAX/Pallas port of OPUModulePyTorch, forward only)
# --------------------------------------------------------------------------- #
class OPUModulePallas:
    def __init__(self, input_features, output_features, initial_log_scale="auto",
                 param_dtype=jnp.float32, key=None, vmem_budget_bytes=None):
        if key is None:
            key = jax.random.PRNGKey(0)
        if initial_log_scale == "auto":
            initial_log_scale = -0.5 * float(np.log(input_features))

        K, N = int(input_features), int(output_features)
        self.input_features = K
        self.output_features = N
        # Lane-pad N so output stores are unmasked (lane-dense) and the
        # real/imag epilogue split is tile-aligned; padding sliced off later.
        self.n_pad = ((N + _LANE - 1) // _LANE) * _LANE

        k_real, k_im = jax.random.split(key)
        std = float(np.sqrt(0.5))
        # PyTorch stores (out, in); keep the transpose (in, out) so x @ W_t
        # matches input.mm(weight.t()).
        self.w_real_t = (std * jax.random.normal(k_real, (K, N), dtype=jnp.float32)
                         ).astype(param_dtype)
        self.w_im_t = (std * jax.random.normal(k_im, (K, N), dtype=jnp.float32)
                       ).astype(param_dtype)
        self.log_scale = jnp.full((1,), float(initial_log_scale), dtype=jnp.float32)

        if vmem_budget_bytes is None:
            vmem_budget_bytes = _default_vmem_budget()
        self._budget = int(vmem_budget_bytes)
        self._n_cores = _tensorcores_per_device()

        w_item = jnp.dtype(param_dtype).itemsize
        x_item = 4  # x stays f32 in HBM; any bf16 cast happens inside the kernel
        self.tn, self.tk, self.single_buffer_w = _choose_weight_tiles(
            K, self.n_pad, w_item, x_item, self._budget)

        # Fused, lane-padded, per-tn-block interleaved weight:
        #   columns [j*2tn, (j+1)*2tn) = [ real block j | imag block j ]
        pad = self.n_pad - N
        wr = jnp.pad(self.w_real_t, ((0, 0), (0, pad)))
        wi = jnp.pad(self.w_im_t, ((0, 0), (0, pad)))
        nb = self.n_pad // self.tn
        self.w_fused = jnp.concatenate(
            [wr.reshape(K, nb, self.tn), wi.reshape(K, nb, self.tn)], axis=2
        ).reshape(K, 2 * self.n_pad)

    def __call__(self, x, *, tm=None):
        if x.ndim != 2:
            raise ValueError("expected 2-D input (batch, features)")
        B, K = x.shape
        if K != self.input_features:
            raise ValueError(f"expected input features {self.input_features}, got {K}")
        if x.dtype == jnp.float64:
            x = x.astype(jnp.float32)
        # No wrapper-side cast to the weight dtype: on the bf16 path the tile is
        # cast inside the kernel instead of paying an extra full HBM pass here.
        x_item = jnp.dtype(x.dtype).itemsize
        w_item = jnp.dtype(self.w_fused.dtype).itemsize
        with_acc = (K // self.tk) > 1
        w_buffers = 1 if self.single_buffer_w else 2
        if tm is None:
            tm = _choose_batch_tile(
                B, self.tn, self.tk, x_item, w_item, self._budget,
                _sublane_align(x.dtype), w_buffers, with_acc,
                n_out_blocks=self.n_pad // self.tn, n_cores=self._n_cores)
        _validate_tiles(B, K, self.n_pad, tm, self.tn, self.tk, x.dtype)
        out = opu_forward(x, self.w_fused, self.log_scale,
                          tm=tm, tn=self.tn, tk=self.tk,
                          single_buffer_w=self.single_buffer_w)
        if self.n_pad != self.output_features:
            out = out[:, :self.output_features]
        return out


# --------------------------------------------------------------------------- #
# Self-test
# --------------------------------------------------------------------------- #
def _reference(x, module):
    hi = jax.lax.Precision.HIGHEST
    xf = x.astype(jnp.float32)
    out_real = jnp.dot(xf, module.w_real_t.astype(jnp.float32), precision=hi)
    out_im = jnp.dot(xf, module.w_im_t.astype(jnp.float32), precision=hi)
    return jnp.exp(module.log_scale) * (out_real ** 2 + out_im ** 2)


if __name__ == "__main__":
    keys = jax.random.split(jax.random.PRNGKey(0), 8)

    # Config 1: tiny, lane-aligned, resident weights, fused-K kernel (2-D grid).
    B1, K1, N1 = 8, 32, 128
    x1 = jax.random.normal(keys[0], (B1, K1), dtype=jnp.float32)
    mod1 = OPUModulePallas(K1, N1, key=keys[1])
    out1 = jax.block_until_ready(mod1(x1))
    np.testing.assert_allclose(np.asarray(out1), np.asarray(_reference(x1, mod1)),
                               rtol=1e-4, atol=1e-3)
    assert out1.shape == (B1, N1) and out1.dtype == jnp.float32

    # Config 2: resident weights with multiple batch tiles on dual-TC parts.
    B2, K2, N2 = 16, 256, 256
    x2 = jax.random.normal(keys[2], (B2, K2), dtype=jnp.float32)
    mod2 = OPUModulePallas(K2, N2, key=keys[3])
    out2 = jax.block_until_ready(mod2(x2))
    np.testing.assert_allclose(np.asarray(out2), np.asarray(_reference(x2, mod2)),
                               rtol=1e-4, atol=1e-3)
    assert out2.shape == (B2, N2)

    # Config 3: output features not lane aligned -> padded weights, sliced output.
    B3, K3, N3 = 8, 48, 96
    x3 = jax.random.normal(keys[4], (B3, K3), dtype=jnp.float32)
    mod3 = OPUModulePallas(K3, N3, key=keys[5])
    out3 = jax.block_until_ready(mod3(x3))
    np.testing.assert_allclose(np.asarray(out3), np.asarray(_reference(x3, mod3)),
                               rtol=2e-4, atol=1e-2)
    assert out3.shape == (B3, N3)

    # Config 4: artificially tiny VMEM budget forces the streaming / multi-k
    # accumulator path (tk < K), exercising the write-then-accumulate kernel.
    B4, K4, N4 = 32, 512, 256
    x4 = jax.random.normal(keys[6], (B4, K4), dtype=jnp.float32)
    mod4 = OPUModulePallas(K4, N4, key=keys[7], vmem_budget_bytes=1 << 20)
    assert mod4.tk < K4, "expected the forced multi-k path"
    out4 = jax.block_until_ready(mod4(x4))
    np.testing.assert_allclose(np.asarray(out4), np.asarray(_reference(x4, mod4)),
                               rtol=2e-4, atol=1e-2)
    assert out4.shape == (B4, N4)

    print("KERNEL_OK")
</pallas_src>

<mosaic_0001>
module attributes {stable_mosaic.version = 11 : i64} {
  func.func @_opu_kernel_fused_k(%arg0: i32, %arg1: i32, %arg2: memref<1xf32, #tpu.memory_space<smem>>, %arg3: memref<8x32xf32, #tpu.memory_space<vmem>>, %arg4: memref<32x256xf32, #tpu.memory_space<vmem>>, %arg5: memref<8x128xf32, #tpu.memory_space<vmem>>) attributes {dimension_semantics = [#tpu.dimension_semantics<parallel>, #tpu.dimension_semantics<parallel>], iteration_bounds = array<i64: 1, 1>, scalar_prefetch = 1 : i64, scratch_operands = 0 : i64, tpu.core_type = #tpu.core_type<tc>, window_params = [{transform_indices = @transform_0, window_bounds = array<i64: 8, 32>}, {transform_indices = @transform_1, window_bounds = array<i64: 32, 256>}, {transform_indices = @transform_2, window_bounds = array<i64: 8, 128>}]} {
    %c0 = arith.constant 0 : index
    %c0_0 = arith.constant 0 : index
    %0 = vector.load %arg3[%c0, %c0_0] : memref<8x32xf32, #tpu.memory_space<vmem>>, vector<8x32xf32>
    %c0_1 = arith.constant 0 : index
    %c0_2 = arith.constant 0 : index
    %1 = vector.load %arg4[%c0_1, %c0_2] : memref<32x256xf32, #tpu.memory_space<vmem>>, vector<32x256xf32>
    %cst = arith.constant dense<0.000000e+00> : vector<8x256xf32>
    %2 = tpu.matmul %0, %1, %cst {dimension_numbers = #tpu.dot_dimension_numbers<[1], [0], [0], [1], [0, 0, 1, 1], [], []>} : vector<8x32xf32>, vector<32x256xf32>, vector<8x256xf32> -> vector<8x256xf32>
    %3 = vector.extract_strided_slice %2 {offsets = [0, 0], sizes = [8, 128], strides = [1, 1]} : vector<8x256xf32> to vector<8x128xf32>
    %4 = vector.extract_strided_slice %2 {offsets = [0, 128], sizes = [8, 128], strides = [1, 1]} : vector<8x256xf32> to vector<8x128xf32>
    %c0_3 = arith.constant 0 : index
    %5 = memref.load %arg2[%c0_3] : memref<1xf32, #tpu.memory_space<smem>>
    %6 = math.exp %5 : f32
    %7 = arith.mulf %3, %3 : vector<8x128xf32>
    %8 = arith.mulf %4, %4 : vector<8x128xf32>
    %9 = arith.addf %7, %8 : vector<8x128xf32>
    %10 = vector.broadcast %6 : f32 to vector<8x128xf32>
    %11 = arith.mulf %10, %9 : vector<8x128xf32>
    %c0_4 = arith.constant 0 : index
    %c0_5 = arith.constant 0 : index
    %12 = vector.load %arg5[%c0_4, %c0_5] : memref<8x128xf32, #tpu.memory_space<vmem>>, vector<8x128xf32>
    tpu.vector_store %arg5[%c0_4, %c0_5], %11 {strides = array<i32>} : memref<8x128xf32, #tpu.memory_space<vmem>>, vector<8x128xf32>,
    return
  }
  func.func @transform_0(%arg0: i32, %arg1: i32, %arg2: memref<1xf32, #tpu.memory_space<smem>>) -> (i32, i32) {
    %c0_i32 = arith.constant 0 : i32
    %c0_i32_0 = arith.constant 0 : i32
    return %arg1, %c0_i32 : i32, i32
  }
  func.func @transform_1(%arg0: i32, %arg1: i32, %arg2: memref<1xf32, #tpu.memory_space<smem>>) -> (i32, i32) {
    %c0_i32 = arith.constant 0 : i32
    %c0_i32_0 = arith.constant 0 : i32
    return %c0_i32, %arg0 : i32, i32
  }
  func.func @transform_2(%arg0: i32, %arg1: i32, %arg2: memref<1xf32, #tpu.memory_space<smem>>) -> (i32, i32) {
    %c0_i32 = arith.constant 0 : i32
    return %arg1, %arg0 : i32, i32
  }
}

</mosaic_0001>

<llo_original>
// kernel: opu_forward.1
$region0: #{opu_forward.1}
  #allocation0 [shape = 'u32[]', space=smem, size = 0x4, offset = 0x4, fixed_abs, tag = 'smem constant byte address 0x4 - core index']
  #allocation1 [shape = 'u32[144,128]{1,0:T(1,128)}', space=vmem, size = 0x12000, scoped, tag = 'internal scratch']
  #allocation2 [shape = 's32[1]{0}', space=sflag, size = 0x4, scoped, tag = 'scoped memory for opu_forward.1']
  #allocation3 [shape = 'f32[1]{0:T(128)S(6)}', space=smem, size = 0x200, scoped, tag = 'prefetched SMEM operand 0']
  %s0 = inlined_call_operand.<no memory space> [shape: f32[1], index: 0, kind: input, shape index: {}]
  %s1 = inlined_call_operand.hbm [shape: f32[8,32], index: 1, kind: input, shape index: {}]
  %s2 = inlined_call_operand.hbm [shape: f32[32,256], index: 2, kind: input, shape index: {}]
  %s3 = inlined_call_operand.hbm [shape: f32[8,128], index: 3, kind: output, shape index: {}]
  %s4 = sld [smem:[#allocation0]]
  $region26: #{opu_forward.1} parent=0
    _
  %s6 = ssub.s32 1, %s4
  %s7 = scalar_select 0, %s6, %s4
  %8 = sst [smem:[#allocation3]] %s0
  $region1: #{opu_forward.1} parent=0
    #allocation4 [shape = 'u8[4096]{0}', space=vmem, size = 0x1000, scoped, tag = 'input window, operand 1, single buffered']
    #allocation5 [shape = 's32[1]{0}', space=sflag, size = 0x4, scoped, tag = 'scoped memory for opu_forward.1']
    #allocation6 [shape = 's32[1]{0}', space=sflag, size = 0x4, scoped, tag = 'scoped memory for opu_forward.1']
    #allocation7 [shape = 'u8[32768]{0}', space=vmem, size = 0x8000, scoped, tag = 'input window, operand 2, single buffered']
    #allocation8 [shape = 's32[1]{0}', space=sflag, size = 0x4, scoped, tag = 'scoped memory for opu_forward.1']
    #allocation9 [shape = 'u8[4096]{0}', space=vmem, size = 0x1000, scoped, tag = 'output window, operand 0, single buffered']
    %9 = vsyncpa [#allocation5], 0
    %10 = vsyncpa [#allocation8], 0
    %11 = vsyncpa [#allocation6], 0
    // Predicated region
    $region2: #{opu_forward.1} parent=1 // pred_check
      _
    $region3: #{opu_forward.1} parent=1 // pred_check_branch
      %13 = sbr.rel (0) target = $region5
    $region4: #{opu_forward.1} parent=1 // pred_region
      %s15 = ssub.s32 128, 128
      %16 = vsyncadd [#allocation5], %s15
      %s18 = sshll.u32 [#allocation4], 4
      %s19 = int_to_ptr.vmem [resolvable:$true] %s18
      %21 = dma.hbm_to_vmem [thread:$0]  %s1, 128, %s19, [#allocation5]
    $region5: #{opu_forward.1} parent=1 // pred_fallthru
      _
    // Predicated region
    $region6: #{opu_forward.1} parent=1 // pred_check
      _
    $region7: #{opu_forward.1} parent=1 // pred_check_branch
      %23 = sbr.rel (0) target = $region9
    $region8: #{opu_forward.1} parent=1 // pred_region
      %s25 = ssub.s32 1024, 1024
      %26 = vsyncadd [#allocation8], %s25
      %s27 = sshll.u32 [#allocation7], 4
      %s28 = int_to_ptr.vmem [resolvable:$true] %s27
      %33 = dma.hbm_to_vmem [thread:$0]  %s2, 1024, %s28, [#allocation8], 256, 256, 16
    $region9: #{opu_forward.1} parent=1 // pred_fallthru
      _
    // Predicated region
    $region10: #{opu_forward.1} parent=1 // pred_check
      _
    $region11: #{opu_forward.1} parent=1 // pred_check_branch
      %35 = sbr.rel (0) target = $region13
    $region12: #{opu_forward.1} parent=1 // pred_region
      %36 = dma.done [#allocation5], 128
    $region13: #{opu_forward.1} parent=1 // pred_fallthru
      _
    // Predicated region
    $region14: #{opu_forward.1} parent=1 // pred_check
      _
    $region15: #{opu_forward.1} parent=1 // pred_check_branch
      %38 = sbr.rel (0) target = $region17
    $region16: #{opu_forward.1} parent=1 // pred_region
      %39 = dma.done [#allocation8], 1024
    $region17: #{opu_forward.1} parent=1 // pred_fallthru
      _
    %v40 = vld [vmem:[#allocation4] sm:$0xff]
    %v41 = vld [vmem:[#allocation7] sm:$0xff]
    %v42 = vld [vmem:[#allocation7 + $0x8] sm:$0xff]
    %v43 = vld [vmem:[#allocation7 + $0x10] sm:$0xff]
    %v44 = vld [vmem:[#allocation7 + $0x18] sm:$0xff]
    %v45 = vld [vmem:[#allocation7 + $0x20] sm:$0xff]
    %v46 = vld [vmem:[#allocation7 + $0x28] sm:$0xff]
    %v47 = vld [vmem:[#allocation7 + $0x30] sm:$0xff]
    %v48 = vld [vmem:[#allocation7 + $0x38] sm:$0xff]
    %vm49 = vcmask 261120
    %v51 = vsel %vm49, %v40, 0
    %53 = vmatprep.subr.mxu0 0.0
    %54 = vmatpush1.msra.mxu0 0.0
    %55 = vmatprep.subr.mxu0 0.0
    %56 = vmatpush1.msra.mxu0 0.0
    %57 = vmatprep.subr.mxu0 0.0
    %58 = vmatpush1.msra.mxu0 0.0
    %59 = vmatprep.subr.mxu0 0.0
    %60 = vmatpush1.msra.mxu0 0.0
    %61 = vmatprep.subr.mxu0 0.0
    %62 = vmatpush1.msra.mxu0 0.0
    %63 = vmatprep.subr.mxu0 0.0
    %64 = vmatpush1.msra.mxu0 0.0
    %65 = vmatprep.subr.mxu0 0.0
    %66 = vmatpush1.msra.mxu0 0.0
    %67 = vmatprep.subr.mxu0 0.0
    %68 = vmatpush1.msra.mxu0 0.0
    %69 = vmatprep.subr.mxu0 0.0
    %70 = vmatpush1.msra.mxu0 0.0
    %71 = vmatprep.subr.mxu0 0.0
    %72 = vmatpush1.msra.mxu0 0.0
    %73 = vmatprep.subr.mxu0 0.0
    %74 = vmatpush1.msra.mxu0 0.0
    %75 = vmatprep.subr.mxu0 0.0
    %76 = vmatpush1.msra.mxu0 0.0
    %77 = vmatprep.subr.mxu0 %v48
    %78 = vmatpush1.msra.mxu0 %v47
    %79 = vmatprep.subr.mxu0 %v46
    %80 = vmatpush1.msra.mxu0 %v45
    %81 = vmatprep.subr.mxu0 %v44
    %82 = vmatpush1.msra.mxu0 %v43
    %83 = vmatprep.subr.mxu0 %v42
    %84 = vmatpush1.msra.mxu0 %v41
    %85 = vmatprep.subr.mxu0 0.0
    %86 = vmatpush2.msra.mxu0 0.0
    %87 = vmatprep.subr.mxu0 0.0
    %88 = vmatpush2.msra.mxu0 0.0
    %89 = vmatprep.subr.mxu0 0.0
    %90 = vmatpush2.msra.mxu0 0.0
    %91 = vmatprep.subr.mxu0 0.0
    %92 = vmatpush2.msra.mxu0 0.0
    %93 = vmatprep.subr.mxu0 0.0
    %94 = vmatpush2.msra.mxu0 0.0
    %95 = vmatprep.subr.mxu0 0.0
    %96 = vmatpush2.msra.mxu0 0.0
    %97 = vmatprep.subr.mxu0 0.0
    %98 = vmatpush2.msra.mxu0 0.0
    %99 = vmatprep.subr.mxu0 0.0
    %100 = vmatpush2.msra.mxu0 0.0
    %101 = vmatprep.subr.mxu0 0.0
    %102 = vmatpush2.msra.mxu0 0.0
    %103 = vmatprep.subr.mxu0 0.0
    %104 = vmatpush2.msra.mxu0 0.0
    %105 = vmatprep.subr.mxu0 0.0
    %106 = vmatpush2.msra.mxu0 0.0
    %107 = vmatprep.subr.mxu0 0.0
    %108 = vmatpush2.msra.mxu0 0.0
    %109 = vmatprep.subr.mxu0 0.0
    %110 = vmatpush2.msra.mxu0 0.0
    %111 = vmatprep.subr.mxu0 0.0
    %112 = vmatpush2.msra.mxu0 0.0
    %113 = vmatprep.subr.mxu0 0.0
    %114 = vmatpush2.msra.mxu0 0.0
    %115 = vmatprep.subr.mxu0 0.0
    %116 = vmatpush2.msra.mxu0 0.0
    %117 = vmatprep.mubr.f32.mxu0 0.0
    %118 = vmatmul.mubr.f32.gmra.mxu0 %v51
    %v119 = vpop.f32.mrf.mxu0
    %v120 = vadd.f32 0.0, %v119
    %v121 = vpop.f32.mrf.mxu0
    %v122 = vadd.f32 0.0, %v121
    %123 = vdwg.mxu0
    %s124 = sld [smem:[#allocation3]]
    %v125 = vstv %s124
    %v126 = vmul.f32 %v125, 1.442695
    %v127 = vpow.pop %v126
    %s128 = vtos %v127
    %v129 = vmul.f32 %v120, %v120
    %v130 = vmul.f32 %v122, %v122
    %v131 = vadd.f32 %v129, %v130
    %v132 = vstv %s128
    %v133 = vmul.f32 %v132, %v131
    %134 = vst [vmem:[#allocation9] sm:$0xff] %v133
    // Predicated region
    $region18: #{opu_forward.1} parent=1 // pred_check
      _
    $region19: #{opu_forward.1} parent=1 // pred_check_branch
      %136 = sbr.rel (0) target = $region21
    $region20: #{opu_forward.1} parent=1 // pred_region
      %s138 = ssub.s32 128, 128
      %139 = vsyncadd [#allocation6], %s138
      %s141 = sshll.u32 [#allocation9], 4
      %s142 = int_to_ptr.vmem [resolvable:$true] %s141
      %144 = dma.vmem_to_hbm [thread:$0]  %s142, 128, %s3, [#allocation6]
    $region21: #{opu_forward.1} parent=1 // pred_fallthru
      _
    // Predicated region
    $region22: #{opu_forward.1} parent=1 // pred_check
      _
    $region23: #{opu_forward.1} parent=1 // pred_check_branch
      %146 = sbr.rel (0) target = $region25
    $region24: #{opu_forward.1} parent=1 // pred_region
      %147 = dma.done [#allocation6], 128
    $region25: #{opu_forward.1} parent=1 // pred_fallthru
      _
    %148 = vsyncpa [#allocation5], 1
    %149 = vsyncpa [#allocation8], 1
    %150 = vsyncpa [#allocation6], 1

</llo_original>
